<compile_context>
chip_gen: v7x
topology: tpu7x:2x2x1
jax: 0.10.0
libtpu: 0.0.40
codegen_flags: <defaults>
</compile_context>

<pallas_src>
import functools

import jax
import jax.numpy as jnp
from jax.experimental import pallas as pl
from jax.experimental.pallas import tpu as pltpu


# Row indices inside the packed (19, R, 128) array.
_MASS = 0
_ACC = 1    # 1,2,3
_FRC = 4    # 4,5,6
_COM = 7    # 7,8,9
_MOM = 10   # 10,11,12  (dL/dt about COM)
_COP = 13   # 13,14,15
_TAU = 16   # 16,17,18
_N_ROWS = 19

_LANES = 128
_SUBLANES = 8
_MAX_TILE_ROWS = 64          # 64 * 128 = 8192 batch elements per grid step


def _round_up(x: int, m: int) -> int:
    return ((x + m - 1) // m) * m


def _dyn_consistency_kernel(
    packed_ref,   # (19, TR, 128) VMEM: component-major packed inputs
    out_ref,      # (1, 1) SMEM: total weighted loss
    sums_ref,     # (2,)  SMEM scratch: [sum(trans residual^2), sum(rot residual^2)]
    *,
    gravity: float,
    normalize_by_mass: bool,
    trans_coef: float,       # translational_weight * dt^2 / n_elems (folded)
    rot_coef: float,         # rotational_weight    * dt^2 / n_elems (folded)
):
    i = pl.program_id(0)

    @pl.when(i == 0)
    def _init():
        sums_ref[0] = 0.0
        sums_ref[1] = 0.0

    m = packed_ref[_MASS]                       # (TR, 128)
    ax = packed_ref[_ACC + 0]
    ay = packed_ref[_ACC + 1]
    az = packed_ref[_ACC + 2]
    fx = packed_ref[_FRC + 0]
    fy = packed_ref[_FRC + 1]
    fz = packed_ref[_FRC + 2]

    # --- translational consistency: m*(a - g) - F_GRF,  g = (0, -gravity, 0) ---
    rfx = m * ax - fx
    rfy = m * (ay + gravity) - fy
    rfz = m * az - fz
    if normalize_by_mass:
        inv_m = pl.reciprocal(m + 1e-8, approx=False)   # EUP; reused across x/y/z
        rfx = rfx * inv_m
        rfy = rfy * inv_m
        rfz = rfz * inv_m
    trans_sq = jnp.sum(rfx * rfx + rfy * rfy + rfz * rfz)

    # --- rotational consistency: (r x F + tau) - dL/dt ---
    rx = packed_ref[_COP + 0] - packed_ref[_COM + 0]
    ry = packed_ref[_COP + 1] - packed_ref[_COM + 1]
    rz = packed_ref[_COP + 2] - packed_ref[_COM + 2]
    mrx = ry * fz - rz * fy + packed_ref[_TAU + 0] - packed_ref[_MOM + 0]
    mry = rz * fx - rx * fz + packed_ref[_TAU + 1] - packed_ref[_MOM + 1]
    mrz = rx * fy - ry * fx + packed_ref[_TAU + 2] - packed_ref[_MOM + 2]
    rot_sq = jnp.sum(mrx * mrx + mry * mry + mrz * mrz)

    sums_ref[0] = sums_ref[0] + trans_sq
    sums_ref[1] = sums_ref[1] + rot_sq

    @pl.when(i == pl.num_programs(0) - 1)
    def _finalize():
        # dt^2, 1/n_elems and the loss weights are folded into the coefficients.
        out_ref[0, 0] = trans_coef * sums_ref[0] + rot_coef * sums_ref[1]


def _pack_inputs(total_mass, vecs, batch, batch_pad):
    """Pack mass + six (B,3) vectors into a component-major (19, R, 128) block."""
    rows = [jnp.reshape(total_mass.astype(jnp.float32), (1, batch))]
    for v in vecs:
        rows.append(v.astype(jnp.float32).T)          # (3, B), component-major
    packed = jnp.concatenate(rows, axis=0)            # (19, B)
    packed = jnp.pad(packed, ((0, 0), (0, batch_pad - batch)))
    return packed.reshape(_N_ROWS, batch_pad // _LANES, _LANES)


def dynamical_consistency_loss(
    com_position,       # (B, 3)
    com_acceleration,   # (B, 3)
    moment_about_com,   # (B, 3)  dL/dt about COM
    total_mass,         # (B, 1) or (B,)
    force,              # (B, 3)  contact_output.force
    cop,                # (B, 3)  contact_output.cop
    torque,             # (B, 3)  contact_output.torque
    *,
    gravity: float = 9.81,
    fps: float = 20.0,
    translational_weight: float = 1.0,
    rotational_weight: float = 1.0,
    normalize_by_mass: bool = True,
    normalize_by_time: bool = True,
    reduction: str = "mean",
):
    assert reduction in ("mean", "sum")
    batch = com_position.shape[0]

    # Batch tiling: batch lives on the (sublane, lane) plane of the packed block.
    rows_needed = -(-batch // _LANES)                               # cdiv
    tile_rows = min(_round_up(rows_needed, _SUBLANES), _MAX_TILE_ROWS)
    rows_pad = _round_up(rows_needed, tile_rows)
    batch_pad = rows_pad * _LANES
    grid = (rows_pad // tile_rows,)

    packed = _pack_inputs(
        total_mass,
        [com_acceleration, force, com_position, moment_about_com, cop, torque],
        batch, batch_pad,
    )

    # Fold dt^2, the MSE 'mean' denominator and the weights into two scalars.
    dt = 1.0 / fps
    t_scale = dt * dt if normalize_by_time else 1.0
    denom = float(batch * 3) if reduction == "mean" else 1.0
    trans_coef = float(translational_weight) * t_scale / denom
    rot_coef = float(rotational_weight) * t_scale / denom

    kernel = functools.partial(
        _dyn_consistency_kernel,
        gravity=float(gravity),
        normalize_by_mass=normalize_by_mass,
        trans_coef=trans_coef,
        rot_coef=rot_coef,
    )

    out = pl.pallas_call(
        kernel,
        out_shape=jax.ShapeDtypeStruct((1, 1), jnp.float32),
        grid_spec=pltpu.PrefetchScalarGridSpec(
            num_scalar_prefetch=0,
            grid=grid,
            in_specs=[
                pl.BlockSpec((_N_ROWS, tile_rows, _LANES), lambda i: (0, i, 0)),
            ],
            out_specs=pl.BlockSpec(
                (1, 1), lambda i: (0, 0),
                memory_space=pltpu.MemorySpace.SMEM,
            ),
            scratch_shapes=[pltpu.SMEM((2,), jnp.float32)],
        ),
        compiler_params=pltpu.CompilerParams(
            dimension_semantics=("arbitrary",),
        ),
    )(packed)
    return out[0, 0]


def _reference(com_position, com_acceleration, moment_about_com, total_mass,
               force, cop, torque, gravity=9.81, fps=20.0, tw=1.0, rw=1.0):
    """Plain-JAX reference mirroring the PyTorch module (mean reduction)."""
    dt = 1.0 / fps
    g = jnp.array([0.0, -gravity, 0.0], dtype=jnp.float32)[None, :]
    req = total_mass * (com_acceleration - g)
    fres = (req - force) / (total_mass + 1e-8) * dt
    trans = jnp.mean(fres ** 2)
    r = cop - com_position
    grf_mom = jnp.cross(r, force, axis=1) + torque
    mres = (grf_mom - moment_about_com) * dt
    rot = jnp.mean(mres ** 2)
    return tw * trans + rw * rot


if __name__ == "__main__":
    B = 8  # batch
    key = jax.random.PRNGKey(0)
    keys = jax.random.split(key, 7)

    com_position = jax.random.normal(keys[0], (B, 3), dtype=jnp.float32)
    com_acceleration = jax.random.normal(keys[1], (B, 3), dtype=jnp.float32)
    moment_about_com = jax.random.normal(keys[2], (B, 3), dtype=jnp.float32)
    total_mass = 60.0 + 10.0 * jax.random.uniform(keys[3], (B, 1), dtype=jnp.float32)
    force = 100.0 * jax.random.normal(keys[4], (B, 3), dtype=jnp.float32)
    cop = jax.random.normal(keys[5], (B, 3), dtype=jnp.float32)
    torque = jax.random.normal(keys[6], (B, 3), dtype=jnp.float32)

    loss = dynamical_consistency_loss(
        com_position, com_acceleration, moment_about_com, total_mass,
        force, cop, torque,
        gravity=9.81, fps=20.0,
        translational_weight=1.0, rotational_weight=1.0,
        normalize_by_mass=True, normalize_by_time=True, reduction="mean",
    )
    loss = jax.block_until_ready(loss)

    ref = _reference(com_position, com_acceleration, moment_about_com,
                     total_mass, force, cop, torque)
    assert jnp.allclose(loss, ref, rtol=1e-5, atol=1e-6), (loss, ref)

    print("KERNEL_OK")
</pallas_src>

<mosaic_0001>
module attributes {stable_mosaic.version = 11 : i64} {
  func.func @_dyn_consistency_kernel(%arg0: i32, %arg1: memref<19x8x128xf32, #tpu.memory_space<vmem>>, %arg2: memref<1x1xf32, #tpu.memory_space<smem>>, %arg3: memref<2xf32, #tpu.memory_space<smem>>) attributes {dimension_semantics = [#tpu.dimension_semantics<arbitrary>], iteration_bounds = array<i64: 1>, scalar_prefetch = 0 : i64, scratch_operands = 1 : i64, tpu.core_type = #tpu.core_type<tc>, window_params = [{transform_indices = @transform_0, window_bounds = array<i64: 19, 8, 128>}, {transform_indices = @transform_1, window_bounds = array<i64: 1, 1>}]} {
    %c0_i32 = arith.constant 0 : i32
    %0 = arith.cmpi eq, %arg0, %c0_i32 : i32
    %1 = arith.extui %0 : i1 to i32
    %c0_i32_0 = arith.constant 0 : i32
    %2 = arith.cmpi ne, %1, %c0_i32_0 : i32
    scf.if %2 {
      %cst_48 = arith.constant 0.000000e+00 : f32
      %c0_49 = arith.constant 0 : index
      %100 = memref.load %arg3[%c0_49] : memref<2xf32, #tpu.memory_space<smem>>
      memref.store %cst_48, %arg3[%c0_49] : memref<2xf32, #tpu.memory_space<smem>>
      %cst_50 = arith.constant 0.000000e+00 : f32
      %c1_51 = arith.constant 1 : index
      %101 = memref.load %arg3[%c1_51] : memref<2xf32, #tpu.memory_space<smem>>
      memref.store %cst_50, %arg3[%c1_51] : memref<2xf32, #tpu.memory_space<smem>>
    } else {
    }
    %c0 = arith.constant 0 : index
    %c0_1 = arith.constant 0 : index
    %c0_2 = arith.constant 0 : index
    %3 = vector.load %arg1[%c0, %c0_1, %c0_2] : memref<19x8x128xf32, #tpu.memory_space<vmem>>, vector<1x8x128xf32>
    %4 = vector.shape_cast %3 : vector<1x8x128xf32> to vector<8x128xf32>
    %c1 = arith.constant 1 : index
    %c0_3 = arith.constant 0 : index
    %c0_4 = arith.constant 0 : index
    %5 = vector.load %arg1[%c1, %c0_3, %c0_4] : memref<19x8x128xf32, #tpu.memory_space<vmem>>, vector<1x8x128xf32>
    %6 = vector.shape_cast %5 : vector<1x8x128xf32> to vector<8x128xf32>
    %c2 = arith.constant 2 : index
    %c0_5 = arith.constant 0 : index
    %c0_6 = arith.constant 0 : index
    %7 = vector.load %arg1[%c2, %c0_5, %c0_6] : memref<19x8x128xf32, #tpu.memory_space<vmem>>, vector<1x8x128xf32>
    %8 = vector.shape_cast %7 : vector<1x8x128xf32> to vector<8x128xf32>
    %c3 = arith.constant 3 : index
    %c0_7 = arith.constant 0 : index
    %c0_8 = arith.constant 0 : index
    %9 = vector.load %arg1[%c3, %c0_7, %c0_8] : memref<19x8x128xf32, #tpu.memory_space<vmem>>, vector<1x8x128xf32>
    %10 = vector.shape_cast %9 : vector<1x8x128xf32> to vector<8x128xf32>
    %c4 = arith.constant 4 : index
    %c0_9 = arith.constant 0 : index
    %c0_10 = arith.constant 0 : index
    %11 = vector.load %arg1[%c4, %c0_9, %c0_10] : memref<19x8x128xf32, #tpu.memory_space<vmem>>, vector<1x8x128xf32>
    %12 = vector.shape_cast %11 : vector<1x8x128xf32> to vector<8x128xf32>
    %c5 = arith.constant 5 : index
    %c0_11 = arith.constant 0 : index
    %c0_12 = arith.constant 0 : index
    %13 = vector.load %arg1[%c5, %c0_11, %c0_12] : memref<19x8x128xf32, #tpu.memory_space<vmem>>, vector<1x8x128xf32>
    %14 = vector.shape_cast %13 : vector<1x8x128xf32> to vector<8x128xf32>
    %c6 = arith.constant 6 : index
    %c0_13 = arith.constant 0 : index
    %c0_14 = arith.constant 0 : index
    %15 = vector.load %arg1[%c6, %c0_13, %c0_14] : memref<19x8x128xf32, #tpu.memory_space<vmem>>, vector<1x8x128xf32>
    %16 = vector.shape_cast %15 : vector<1x8x128xf32> to vector<8x128xf32>
    %17 = arith.mulf %4, %6 : vector<8x128xf32>
    %18 = arith.subf %17, %12 : vector<8x128xf32>
    %cst = arith.constant 9.810000e+00 : f32
    %19 = vector.broadcast %cst : f32 to vector<8x128xf32>
    %20 = arith.addf %8, %19 : vector<8x128xf32>
    %21 = arith.mulf %4, %20 : vector<8x128xf32>
    %22 = arith.subf %21, %14 : vector<8x128xf32>
    %23 = arith.mulf %4, %10 : vector<8x128xf32>
    %24 = arith.subf %23, %16 : vector<8x128xf32>
    %cst_15 = arith.constant 9.99999993E-9 : f32
    %25 = vector.broadcast %cst_15 : f32 to vector<8x128xf32>
    %26 = arith.addf %4, %25 : vector<8x128xf32>
    %27 = tpu.reciprocal %26 : vector<8x128xf32> -> vector<8x128xf32>
    %28 = arith.mulf %18, %27 : vector<8x128xf32>
    %29 = arith.mulf %22, %27 : vector<8x128xf32>
    %30 = arith.mulf %24, %27 : vector<8x128xf32>
    %31 = arith.mulf %28, %28 : vector<8x128xf32>
    %32 = arith.mulf %29, %29 : vector<8x128xf32>
    %33 = arith.addf %31, %32 : vector<8x128xf32>
    %34 = arith.mulf %30, %30 : vector<8x128xf32>
    %35 = arith.addf %33, %34 : vector<8x128xf32>
    %36 = vector.shape_cast %35 : vector<8x128xf32> to vector<1x8x128xf32>
    %cst_16 = arith.constant dense<0.000000e+00> : vector<1xf32>
    %37 = vector.multi_reduction <add>, %36, %cst_16 [1, 2] : vector<1x8x128xf32> to vector<1xf32>
    %38 = vector.shape_cast %37 : vector<1xf32> to vector<1x1x1xf32>
    %39 = vector.extract %38[0, 0, 0] : f32 from vector<1x1x1xf32>
    %c13 = arith.constant 13 : index
    %c0_17 = arith.constant 0 : index
    %c0_18 = arith.constant 0 : index
    %40 = vector.load %arg1[%c13, %c0_17, %c0_18] : memref<19x8x128xf32, #tpu.memory_space<vmem>>, vector<1x8x128xf32>
    %41 = vector.shape_cast %40 : vector<1x8x128xf32> to vector<8x128xf32>
    %c7 = arith.constant 7 : index
    %c0_19 = arith.constant 0 : index
    %c0_20 = arith.constant 0 : index
    %42 = vector.load %arg1[%c7, %c0_19, %c0_20] : memref<19x8x128xf32, #tpu.memory_space<vmem>>, vector<1x8x128xf32>
    %43 = vector.shape_cast %42 : vector<1x8x128xf32> to vector<8x128xf32>
    %44 = arith.subf %41, %43 : vector<8x128xf32>
    %c14 = arith.constant 14 : index
    %c0_21 = arith.constant 0 : index
    %c0_22 = arith.constant 0 : index
    %45 = vector.load %arg1[%c14, %c0_21, %c0_22] : memref<19x8x128xf32, #tpu.memory_space<vmem>>, vector<1x8x128xf32>
    %46 = vector.shape_cast %45 : vector<1x8x128xf32> to vector<8x128xf32>
    %c8 = arith.constant 8 : index
    %c0_23 = arith.constant 0 : index
    %c0_24 = arith.constant 0 : index
    %47 = vector.load %arg1[%c8, %c0_23, %c0_24] : memref<19x8x128xf32, #tpu.memory_space<vmem>>, vector<1x8x128xf32>
    %48 = vector.shape_cast %47 : vector<1x8x128xf32> to vector<8x128xf32>
    %49 = arith.subf %46, %48 : vector<8x128xf32>
    %c15 = arith.constant 15 : index
    %c0_25 = arith.constant 0 : index
    %c0_26 = arith.constant 0 : index
    %50 = vector.load %arg1[%c15, %c0_25, %c0_26] : memref<19x8x128xf32, #tpu.memory_space<vmem>>, vector<1x8x128xf32>
    %51 = vector.shape_cast %50 : vector<1x8x128xf32> to vector<8x128xf32>
    %c9 = arith.constant 9 : index
    %c0_27 = arith.constant 0 : index
    %c0_28 = arith.constant 0 : index
    %52 = vector.load %arg1[%c9, %c0_27, %c0_28] : memref<19x8x128xf32, #tpu.memory_space<vmem>>, vector<1x8x128xf32>
    %53 = vector.shape_cast %52 : vector<1x8x128xf32> to vector<8x128xf32>
    %54 = arith.subf %51, %53 : vector<8x128xf32>
    %55 = arith.mulf %49, %16 : vector<8x128xf32>
    %56 = arith.mulf %54, %14 : vector<8x128xf32>
    %57 = arith.subf %55, %56 : vector<8x128xf32>
    %c16 = arith.constant 16 : index
    %c0_29 = arith.constant 0 : index
    %c0_30 = arith.constant 0 : index
    %58 = vector.load %arg1[%c16, %c0_29, %c0_30] : memref<19x8x128xf32, #tpu.memory_space<vmem>>, vector<1x8x128xf32>
    %59 = vector.shape_cast %58 : vector<1x8x128xf32> to vector<8x128xf32>
    %60 = arith.addf %57, %59 : vector<8x128xf32>
    %c10 = arith.constant 10 : index
    %c0_31 = arith.constant 0 : index
    %c0_32 = arith.constant 0 : index
    %61 = vector.load %arg1[%c10, %c0_31, %c0_32] : memref<19x8x128xf32, #tpu.memory_space<vmem>>, vector<1x8x128xf32>
    %62 = vector.shape_cast %61 : vector<1x8x128xf32> to vector<8x128xf32>
    %63 = arith.subf %60, %62 : vector<8x128xf32>
    %64 = arith.mulf %54, %12 : vector<8x128xf32>
    %65 = arith.mulf %44, %16 : vector<8x128xf32>
    %66 = arith.subf %64, %65 : vector<8x128xf32>
    %c17 = arith.constant 17 : index
    %c0_33 = arith.constant 0 : index
    %c0_34 = arith.constant 0 : index
    %67 = vector.load %arg1[%c17, %c0_33, %c0_34] : memref<19x8x128xf32, #tpu.memory_space<vmem>>, vector<1x8x128xf32>
    %68 = vector.shape_cast %67 : vector<1x8x128xf32> to vector<8x128xf32>
    %69 = arith.addf %66, %68 : vector<8x128xf32>
    %c11 = arith.constant 11 : index
    %c0_35 = arith.constant 0 : index
    %c0_36 = arith.constant 0 : index
    %70 = vector.load %arg1[%c11, %c0_35, %c0_36] : memref<19x8x128xf32, #tpu.memory_space<vmem>>, vector<1x8x128xf32>
    %71 = vector.shape_cast %70 : vector<1x8x128xf32> to vector<8x128xf32>
    %72 = arith.subf %69, %71 : vector<8x128xf32>
    %73 = arith.mulf %44, %14 : vector<8x128xf32>
    %74 = arith.mulf %49, %12 : vector<8x128xf32>
    %75 = arith.subf %73, %74 : vector<8x128xf32>
    %c18 = arith.constant 18 : index
    %c0_37 = arith.constant 0 : index
    %c0_38 = arith.constant 0 : index
    %76 = vector.load %arg1[%c18, %c0_37, %c0_38] : memref<19x8x128xf32, #tpu.memory_space<vmem>>, vector<1x8x128xf32>
    %77 = vector.shape_cast %76 : vector<1x8x128xf32> to vector<8x128xf32>
    %78 = arith.addf %75, %77 : vector<8x128xf32>
    %c12 = arith.constant 12 : index
    %c0_39 = arith.constant 0 : index
    %c0_40 = arith.constant 0 : index
    %79 = vector.load %arg1[%c12, %c0_39, %c0_40] : memref<19x8x128xf32, #tpu.memory_space<vmem>>, vector<1x8x128xf32>
    %80 = vector.shape_cast %79 : vector<1x8x128xf32> to vector<8x128xf32>
    %81 = arith.subf %78, %80 : vector<8x128xf32>
    %82 = arith.mulf %63, %63 : vector<8x128xf32>
    %83 = arith.mulf %72, %72 : vector<8x128xf32>
    %84 = arith.addf %82, %83 : vector<8x128xf32>
    %85 = arith.mulf %81, %81 : vector<8x128xf32>
    %86 = arith.addf %84, %85 : vector<8x128xf32>
    %87 = vector.shape_cast %86 : vector<8x128xf32> to vector<1x8x128xf32>
    %cst_41 = arith.constant dense<0.000000e+00> : vector<1xf32>
    %88 = vector.multi_reduction <add>, %87, %cst_41 [1, 2] : vector<1x8x128xf32> to vector<1xf32>
    %89 = vector.shape_cast %88 : vector<1xf32> to vector<1x1x1xf32>
    %90 = vector.extract %89[0, 0, 0] : f32 from vector<1x1x1xf32>
    %c0_42 = arith.constant 0 : index
    %91 = memref.load %arg3[%c0_42] : memref<2xf32, #tpu.memory_space<smem>>
    %92 = arith.addf %91, %39 : f32
    %c0_43 = arith.constant 0 : index
    %93 = memref.load %arg3[%c0_43] : memref<2xf32, #tpu.memory_space<smem>>
    memref.store %92, %arg3[%c0_43] : memref<2xf32, #tpu.memory_space<smem>>
    %c1_44 = arith.constant 1 : index
    %94 = memref.load %arg3[%c1_44] : memref<2xf32, #tpu.memory_space<smem>>
    %95 = arith.addf %94, %90 : f32
    %c1_45 = arith.constant 1 : index
    %96 = memref.load %arg3[%c1_45] : memref<2xf32, #tpu.memory_space<smem>>
    memref.store %95, %arg3[%c1_45] : memref<2xf32, #tpu.memory_space<smem>>
    %c0_i32_46 = arith.constant 0 : i32
    %97 = arith.cmpi eq, %arg0, %c0_i32_46 : i32
    %98 = arith.extui %97 : i1 to i32
    %c0_i32_47 = arith.constant 0 : i32
    %99 = arith.cmpi ne, %98, %c0_i32_47 : i32
    scf.if %99 {
      %c0_48 = arith.constant 0 : index
      %100 = memref.load %arg3[%c0_48] : memref<2xf32, #tpu.memory_space<smem>>
      %cst_49 = arith.constant 1.04166669E-4 : f32
      %101 = arith.mulf %cst_49, %100 : f32
      %c1_50 = arith.constant 1 : index
      %102 = memref.load %arg3[%c1_50] : memref<2xf32, #tpu.memory_space<smem>>
      %cst_51 = arith.constant 1.04166669E-4 : f32
      %103 = arith.mulf %cst_51, %102 : f32
      %104 = arith.addf %101, %103 : f32
      %c0_52 = arith.constant 0 : index
      %c0_53 = arith.constant 0 : index
      %105 = memref.load %arg2[%c0_52, %c0_53] : memref<1x1xf32, #tpu.memory_space<smem>>
      memref.store %104, %arg2[%c0_52, %c0_53] : memref<1x1xf32, #tpu.memory_space<smem>>
    } else {
    }
    return
  }
  func.func @transform_0(%arg0: i32) -> (i32, i32, i32) {
    %c0_i32 = arith.constant 0 : i32
    %c0_i32_0 = arith.constant 0 : i32
    %c0_i32_1 = arith.constant 0 : i32
    return %c0_i32, %arg0, %c0_i32_0 : i32, i32, i32
  }
  func.func @transform_1(%arg0: i32) -> (i32, i32) {
    %c0_i32 = arith.constant 0 : i32
    %c0_i32_0 = arith.constant 0 : i32
    %c0_i32_1 = arith.constant 0 : i32
    return %c0_i32, %c0_i32_0 : i32, i32
  }
}

</mosaic_0001>

<llo_original>
// kernel: tpu_custom_call.1
$region0: #{tpu_custom_call.1}
  #allocation0 [shape = 'u32[]', space=smem, size = 0x4, offset = 0x4, fixed_abs, tag = 'smem constant byte address 0x4 - core index']
  #allocation1 [shape = 'u32[144,128]{1,0:T(1,128)}', space=vmem, size = 0x12000, scoped, tag = 'internal scratch']
  #allocation2 [shape = 'f32[2]{0:T(128)}', space=smem, size = 0x200, scoped, tag = 'scratch operand']
  %s0 = inlined_call_operand.hbm [shape: f32[19,8,128], index: 0, kind: input, shape index: {}]
  %s1 = inlined_call_operand.hbm [shape: f32[1,1], index: 1, kind: output, shape index: {}]
  %s2 = sld [smem:[#allocation0]]
  $region26: #{tpu_custom_call.1} parent=0
    _
  %s4 = ssub.s32 1, %s2
  %s5 = scalar_select 0, %s4, %s2
  $region1: #{tpu_custom_call.1} parent=0
    #allocation3 [shape = 'u8[77824]{0}', space=vmem, size = 0x13000, scoped, tag = 'input window, operand 0, single buffered']
    #allocation4 [shape = 's32[1]{0}', space=sflag, size = 0x4, scoped, tag = 'scoped memory for tpu_custom_call.1']
    #allocation5 [shape = 's32[1]{0}', space=sflag, size = 0x4, scoped, tag = 'scoped memory for tpu_custom_call.1']
    #allocation6 [shape = 'u8[512]{0}', space=smem, size = 0x200, scoped, tag = 'output window, operand 0, single buffered']
    %6 = vsyncpa [#allocation4], 0
    %7 = vsyncpa [#allocation5], 0
    // Predicated region
    $region2: #{tpu_custom_call.1} parent=1 // pred_check
      _
    $region3: #{tpu_custom_call.1} parent=1 // pred_check_branch
      %9 = sbr.rel (0) target = $region5
    $region4: #{tpu_custom_call.1} parent=1 // pred_region
      %s11 = ssub.s32 2432, 2432
      %12 = vsyncadd [#allocation4], %s11
      %s13 = sshll.u32 [#allocation3], 4
      %s14 = int_to_ptr.vmem [resolvable:$true] %s13
      %19 = dma.hbm_to_vmem [thread:$0]  %s0, 2432, %s14, [#allocation4], 128, 128, 8
    $region5: #{tpu_custom_call.1} parent=1 // pred_fallthru
      _
    // Predicated region
    $region6: #{tpu_custom_call.1} parent=1 // pred_check
      _
    $region7: #{tpu_custom_call.1} parent=1 // pred_check_branch
      %21 = sbr.rel (0) target = $region9
    $region8: #{tpu_custom_call.1} parent=1 // pred_region
      %22 = dma.done [#allocation4], 2432
    $region9: #{tpu_custom_call.1} parent=1 // pred_fallthru
      _
    %p23 = scmp.eq.s32.totalorder 0, 0
    // Predicated region
    $region10: #{tpu_custom_call.1} parent=1 // pred_check
      %p24 = pneg %p23
    $region11: #{tpu_custom_call.1} parent=1 // pred_check_branch
      %26 = sbr.rel (%p24) target = $region13
    $region12: #{tpu_custom_call.1} parent=1 // pred_region
      %s27 = scalar_lea.smem [#allocation2], 0
      %28 = sst [smem:[%s27]] 0.0
      %s29 = scalar_lea.smem [#allocation2], 1
      %30 = sst [smem:[%s29]] 0.0
    $region13: #{tpu_custom_call.1} parent=1 // pred_fallthru
      _
    %v31 = vld [vmem:[#allocation3] sm:$0xff]
    %s32 = scalar_lea.vmem [#allocation3], 8
    %v33 = vld [vmem:[%s32] sm:$0xff]
    %s34 = scalar_lea.vmem [#allocation3], 16
    %v35 = vld [vmem:[%s34] sm:$0xff]
    %s36 = scalar_lea.vmem [#allocation3], 24
    %v37 = vld [vmem:[%s36] sm:$0xff]
    %s38 = scalar_lea.vmem [#allocation3], 32
    %v39 = vld [vmem:[%s38] sm:$0xff]
    %s40 = scalar_lea.vmem [#allocation3], 40
    %v41 = vld [vmem:[%s40] sm:$0xff]
    %s42 = scalar_lea.vmem [#allocation3], 48
    %v43 = vld [vmem:[%s42] sm:$0xff]
    %v44 = vmul.f32 %v31, %v33
    %v45 = vsub.f32 %v44, %v39
    %v46 = vadd.f32 %v35, 9.81
    %v47 = vmul.f32 %v31, %v46
    %v48 = vsub.f32 %v47, %v41
    %v49 = vmul.f32 %v31, %v37
    %v50 = vsub.f32 %v49, %v43
    %v51 = vadd.f32 %v31, 1e-08
    %v52 = vrcp.pop %v51
    %v53 = vmul.f32 %v45, %v52
    %v54 = vmul.f32 %v48, %v52
    %v55 = vmul.f32 %v50, %v52
    %v56 = vmul.f32 %v53, %v53
    %v57 = vmul.f32 %v54, %v54
    %v58 = vadd.f32 %v56, %v57
    %v59 = vmul.f32 %v55, %v55
    %v60 = vadd.f32 %v58, %v59
    %61 = vadd.xlane.f32.xlu0 %v60
    %v62 = vpop.xlane.xlu0 %61
    %v63 = vrot.slane %v62, 4
    %v64 = vadd.f32 %v62, %v63
    %v65 = vrot.slane %v64, 2
    %v66 = vadd.f32 %v64, %v65
    %v67 = vrot.slane %v66, 1
    %v68 = vadd.f32 %v66, %v67
    %s69 = vtos %v68
    %s70 = scalar_lea.vmem [#allocation3], 104
    %v71 = vld [vmem:[%s70] sm:$0xff]
    %s72 = scalar_lea.vmem [#allocation3], 56
    %v73 = vld [vmem:[%s72] sm:$0xff]
    %v74 = vsub.f32 %v71, %v73
    %s75 = scalar_lea.vmem [#allocation3], 112
    %v76 = vld [vmem:[%s75] sm:$0xff]
    %s77 = scalar_lea.vmem [#allocation3], 64
    %v78 = vld [vmem:[%s77] sm:$0xff]
    %v79 = vsub.f32 %v76, %v78
    %s80 = scalar_lea.vmem [#allocation3], 120
    %v81 = vld [vmem:[%s80] sm:$0xff]
    %s82 = scalar_lea.vmem [#allocation3], 72
    %v83 = vld [vmem:[%s82] sm:$0xff]
    %v84 = vsub.f32 %v81, %v83
    %v85 = vmul.f32 %v79, %v43
    %v86 = vmul.f32 %v84, %v41
    %v87 = vsub.f32 %v85, %v86
    %s88 = scalar_lea.vmem [#allocation3], 128
    %v89 = vld [vmem:[%s88] sm:$0xff]
    %v90 = vadd.f32 %v87, %v89
    %s91 = scalar_lea.vmem [#allocation3], 80
    %v92 = vld [vmem:[%s91] sm:$0xff]
    %v93 = vsub.f32 %v90, %v92
    %v94 = vmul.f32 %v84, %v39
    %v95 = vmul.f32 %v74, %v43
    %v96 = vsub.f32 %v94, %v95
    %s97 = scalar_lea.vmem [#allocation3], 136
    %v98 = vld [vmem:[%s97] sm:$0xff]
    %v99 = vadd.f32 %v96, %v98
    %s100 = scalar_lea.vmem [#allocation3], 88
    %v101 = vld [vmem:[%s100] sm:$0xff]
    %v102 = vsub.f32 %v99, %v101
    %v103 = vmul.f32 %v74, %v41
    %v104 = vmul.f32 %v79, %v39
    %v105 = vsub.f32 %v103, %v104
    %s106 = scalar_lea.vmem [#allocation3], 144
    %v107 = vld [vmem:[%s106] sm:$0xff]
    %v108 = vadd.f32 %v105, %v107
    %s109 = scalar_lea.vmem [#allocation3], 96
    %v110 = vld [vmem:[%s109] sm:$0xff]
    %v111 = vsub.f32 %v108, %v110
    %v112 = vmul.f32 %v93, %v93
    %v113 = vmul.f32 %v102, %v102
    %v114 = vadd.f32 %v112, %v113
    %v115 = vmul.f32 %v111, %v111
    %v116 = vadd.f32 %v114, %v115
    %117 = vadd.xlane.f32.xlu0 %v116
    %v118 = vpop.xlane.xlu0 %117
    %v119 = vrot.slane %v118, 4
    %v120 = vadd.f32 %v118, %v119
    %v121 = vrot.slane %v120, 2
    %v122 = vadd.f32 %v120, %v121
    %v123 = vrot.slane %v122, 1
    %v124 = vadd.f32 %v122, %v123
    %s125 = vtos %v124
    %s126 = sld [smem:[#allocation2]]
    %s127 = sadd.f32 %s126, %s69
    %s128 = scalar_lea.smem [#allocation2], 0
    %129 = sst [smem:[%s128]] %s127
    %s130 = sld [smem:[#allocation2 + $0x1]]
    %s131 = sadd.f32 %s130, %s125
    %s132 = scalar_lea.smem [#allocation2], 1
    %133 = sst [smem:[%s132]] %s131
    // Predicated region
    $region14: #{tpu_custom_call.1} parent=1 // pred_check
      %p134 = pneg %p23
    $region15: #{tpu_custom_call.1} parent=1 // pred_check_branch
      %136 = sbr.rel (%p134) target = $region17
    $region16: #{tpu_custom_call.1} parent=1 // pred_region
      %s137 = sld [smem:[#allocation2]]
      %s138 = smul.f32 %s137, 0.00010416667
      %s139 = sld [smem:[#allocation2 + $0x1]]
      %s140 = smul.f32 %s139, 0.00010416667
      %s141 = sadd.f32 %s138, %s140
      %s142 = scalar_lea.smem [#allocation6], 0
      %143 = sst [smem:[%s142]] %s141
    $region17: #{tpu_custom_call.1} parent=1 // pred_fallthru
      _
    // Predicated region
    $region18: #{tpu_custom_call.1} parent=1 // pred_check
      _
    $region19: #{tpu_custom_call.1} parent=1 // pred_check_branch
      %145 = sbr.rel (0) target = $region21
    $region20: #{tpu_custom_call.1} parent=1 // pred_region
      %s147 = ssub.s32 16, 16
      %148 = vsyncadd [#allocation5], %s147
      %151 = dma.smem_to_hbm [#allocation6], 16, %s1, [#allocation5]
    $region21: #{tpu_custom_call.1} parent=1 // pred_fallthru
      _
    // Predicated region
    $region22: #{tpu_custom_call.1} parent=1 // pred_check
      _
    $region23: #{tpu_custom_call.1} parent=1 // pred_check_branch
      %153 = sbr.rel (0) target = $region25
    $region24: #{tpu_custom_call.1} parent=1 // pred_region
      %154 = dma.done [#allocation5], 16
    $region25: #{tpu_custom_call.1} parent=1 // pred_fallthru
      _
    %155 = sfence
    %156 = vsyncpa [#allocation4], 1
    %157 = vsyncpa [#allocation5], 1

</llo_original>
